<compile_context>
chip_gen: v7x
topology: tpu7x:2x2x1
jax: 0.10.0
libtpu: 0.0.40
codegen_flags: <defaults>
</compile_context>

<pallas_src>
import functools
import math

import jax
import jax.numpy as jnp
from jax.experimental import pallas as pl
from jax.experimental.pallas import tpu as pltpu

LANE = 128
SUBLANE = 8
ROW_TILE = 512                          # large tiles: DMA efficiency dominates (mem-bound)
VMEM_LIMIT = 48 * 1024 * 1024           # safe on v5e/v6e (128 MiB phys) and v7x (64 MiB phys)
H_RESIDENT_BYTES_MAX = 32 * 1024 * 1024  # keep full activation stack VMEM-resident below this
SMALL_GRAPH_MAX_NODES = 1024            # adj-resident single-kernel fast path threshold
                                        # TODO(synk): could be raised per-generation (v6e/v5e
                                        # have 128 MiB physical VMEM) via pltpu.get_tpu_info().


def _round_up(x, m):
    return (x + m - 1) // m * m


def _node_tiling(n):
    """Return (padded_n, row_tile, k_tile) satisfying the (8,128) block constraints."""
    if n <= 128:
        npad = _round_up(n, SUBLANE)
        return npad, npad, npad
    if n <= ROW_TILE:
        npad = _round_up(n, LANE)
        return npad, npad, npad
    npad = _round_up(n, ROW_TILE)
    return npad, ROW_TILE, ROW_TILE


def _pad2(a, r, c):
    return jnp.pad(a, ((0, r - a.shape[0]), (0, c - a.shape[1])))


def prepare_adjacency(top_adj, geo_adj, text_adj):
    """Pad / bf16-cast / stack the three adjacencies ONCE per graph (hoisted out of forward)."""
    n = top_adj.shape[0]
    npad, _, _ = _node_tiling(n)
    return jnp.stack([_pad2(top_adj, npad, npad),
                      _pad2(geo_adj, npad, npad),
                      _pad2(text_adj, npad, npad)]).astype(jnp.bfloat16)


# ---------------------------------------------------------------------------
# Pallas kernels
# ---------------------------------------------------------------------------

def dense_act_kernel(x_ref, w_ref, o_ref):
    """H[tile] = tanh(X[tile] @ W[enc])  (layer-1 feature transform, bf16 in, f32 MXU acc)."""
    h = jnp.dot(x_ref[...], w_ref[0], preferred_element_type=jnp.float32)
    o_ref[...] = jnp.tanh(h).astype(o_ref.dtype)


def _make_spmm_fused_kernel(*, npad, tk, rows, h_resident, has_w, activation):
    """Z[tile] = sum_k ADJ[enc, tile, k] @ H[enc, k]  (+ fused next-layer transform in epilogue)."""
    def kernel(*refs):
        if has_w:
            adj_ref, h_ref, w_ref, o_ref, acc_ref = refs
        else:
            adj_ref, h_ref, o_ref, acc_ref = refs
        k = pl.program_id(1)

        @pl.when(k == 0)
        def _init():
            acc_ref[...] = jnp.zeros_like(acc_ref)

        if h_resident:
            # Full (3*npad, d) H stack is VMEM-resident; slice this encoder's k-tile.
            en = pl.program_id(0) // rows
            start = pl.multiple_of(en * npad + k * tk, tk)
            h_blk = h_ref[pl.ds(start, tk), :]
        else:
            h_blk = h_ref[...]

        acc_ref[...] += jnp.dot(adj_ref[0], h_blk, preferred_element_type=jnp.float32)

        @pl.when(k == pl.num_programs(1) - 1)
        def _finalize():
            out = acc_ref[...]
            if has_w:
                # Fused next-layer dense transform: hides under the last k-step's adj DMA.
                out = jnp.dot(out.astype(w_ref.dtype), w_ref[0],
                              preferred_element_type=jnp.float32)
                if activation:
                    out = jnp.tanh(out)
            o_ref[...] = out.astype(o_ref.dtype)

    return kernel


def small_graph_encoder_kernel(x_ref, adj_ref, w1_ref, w2_ref, w3_ref, o_ref):
    """All three GCN layers for one encoder with adj VMEM-resident (adj read from HBM once)."""
    adj = adj_ref[0]
    h = jnp.tanh(jnp.dot(x_ref[0], w1_ref[0], preferred_element_type=jnp.float32))
    z = jnp.dot(adj, h.astype(adj.dtype), preferred_element_type=jnp.float32)
    h = jnp.tanh(jnp.dot(z.astype(w2_ref.dtype), w2_ref[0], preferred_element_type=jnp.float32))
    z = jnp.dot(adj, h.astype(adj.dtype), preferred_element_type=jnp.float32)
    h = jnp.dot(z.astype(w3_ref.dtype), w3_ref[0], preferred_element_type=jnp.float32)
    z = jnp.dot(adj, h.astype(adj.dtype), preferred_element_type=jnp.float32)
    o_ref[0] = z.astype(o_ref.dtype)


def combine_q_kernel(zs_ref, ws_ref, mu_ref, musq_ref, z_ref, q_ref, *, v, n_clusters):
    """z = sum_e w_e * z_e ; q = Student-t soft assignment (row tile)."""
    zs = zs_ref[...].astype(jnp.float32)                # [3, tm, D]  (bf16 in HBM)
    ws = ws_ref[...]                                    # [3, 1, D]
    z = zs[0] * ws[0] + zs[1] * ws[1] + zs[2] * ws[2]   # [tm, D]  (pure VPU)
    z_ref[...] = z

    mu = mu_ref[...]                                    # [Kp, D]
    z_sq = jnp.sum(z * z, axis=1, keepdims=True)        # [tm, 1]
    cross = jax.lax.dot_general(z, mu, (((1,), (1,)), ((), ())),
                                preferred_element_type=jnp.float32)      # z @ mu.T  [tm, Kp]
    dist2 = jnp.maximum(z_sq - 2.0 * cross + musq_ref[...], 0.0)         # clamp fp cancellation

    if v == 1.0:
        q = 1.0 / (1.0 + dist2)                          # (v+1)/2 == 1 -> no pow
    else:
        q = jnp.exp(-0.5 * (v + 1.0) * jnp.log1p(dist2 / v))

    kpad = q_ref.shape[1]
    if n_clusters < kpad:
        col = jax.lax.broadcasted_iota(jnp.int32, q.shape, 1)
        q = jnp.where(col < n_clusters, q, 0.0)          # zero padded clusters pre-normalization

    # Exact normalization (q often feeds a KL target distribution downstream).
    q_ref[...] = q / jnp.sum(q, axis=1, keepdims=True)


# ---------------------------------------------------------------------------
# pallas_call wrappers
# ---------------------------------------------------------------------------

def _dense_act(x_flat, w_stack, npad, tm, out_dtype):
    rows = npad // tm
    fin = x_flat.shape[1]
    fout = w_stack.shape[2]
    return pl.pallas_call(
        dense_act_kernel,
        out_shape=jax.ShapeDtypeStruct((3 * npad, fout), out_dtype),
        grid=(3 * rows,),
        in_specs=[
            pl.BlockSpec((tm, fin), lambda i: (i, 0)),
            pl.BlockSpec((1, fin, fout), lambda i: (i // rows, 0, 0)),
        ],
        out_specs=pl.BlockSpec((tm, fout), lambda i: (i, 0)),
        compiler_params=pltpu.CompilerParams(
            dimension_semantics=("parallel",),
            vmem_limit_bytes=VMEM_LIMIT),
    )(x_flat, w_stack)


def _spmm_fused(adj_stack, h_flat, w_next, npad, tm, tk, activation, out_dtype):
    """out[e] = act?((adj[e] @ H[e]) @ W_next[e]); activations stored flattened as (3*npad, d)."""
    d_in = h_flat.shape[1]
    rows = npad // tm
    kblk = npad // tk
    has_w = w_next is not None
    d_out = w_next.shape[2] if has_w else d_in
    h_resident = (h_flat.size * h_flat.dtype.itemsize) <= H_RESIDENT_BYTES_MAX

    kernel = _make_spmm_fused_kernel(npad=npad, tk=tk, rows=rows,
                                     h_resident=h_resident, has_w=has_w,
                                     activation=activation)

    if h_resident:
        h_spec = pl.BlockSpec((3 * npad, d_in), lambda i, k: (0, 0))       # fetched once, total
    else:
        h_spec = pl.BlockSpec((tk, d_in), lambda i, k: ((i // rows) * kblk + k, 0))

    in_specs = [
        pl.BlockSpec((1, tm, tk), lambda i, k: (i // rows, i % rows, k)),  # adj tile stream
        h_spec,
    ]
    args = [adj_stack, h_flat]
    if has_w:
        in_specs.append(pl.BlockSpec((1, d_in, d_out), lambda i, k: (i // rows, 0, 0)))
        args.append(w_next)

    return pl.pallas_call(
        kernel,
        out_shape=jax.ShapeDtypeStruct((3 * npad, d_out), out_dtype),
        grid=(3 * rows, kblk),
        in_specs=in_specs,
        out_specs=pl.BlockSpec((tm, d_out), lambda i, k: (i, 0)),
        scratch_shapes=[pltpu.VMEM((tm, d_in), jnp.float32)],
        compiler_params=pltpu.CompilerParams(
            dimension_semantics=("parallel", "arbitrary"),
            vmem_limit_bytes=VMEM_LIMIT),
    )(*args)


def _small_graph_encode(x_stack3, adj_stack, w1, w2, w3, npad, out_dtype):
    fin = x_stack3.shape[2]
    e1p, e2p, e3p = w1.shape[2], w2.shape[2], w3.shape[2]
    return pl.pallas_call(
        small_graph_encoder_kernel,
        out_shape=jax.ShapeDtypeStruct((3, npad, e3p), out_dtype),
        grid=(3,),
        in_specs=[
            pl.BlockSpec((1, npad, fin), lambda e: (e, 0, 0)),
            pl.BlockSpec((1, npad, npad), lambda e: (e, 0, 0)),
            pl.BlockSpec((1, fin, e1p), lambda e: (e, 0, 0)),
            pl.BlockSpec((1, e1p, e2p), lambda e: (e, 0, 0)),
            pl.BlockSpec((1, e2p, e3p), lambda e: (e, 0, 0)),
        ],
        out_specs=pl.BlockSpec((1, npad, e3p), lambda e: (e, 0, 0)),
        compiler_params=pltpu.CompilerParams(
            dimension_semantics=("parallel",),
            vmem_limit_bytes=VMEM_LIMIT),
    )(x_stack3, adj_stack, w1, w2, w3)


def _combine_and_assign(z_stack, fuse_w, mu_pad, tm, v, n_clusters):
    e, npad, d = z_stack.shape
    kp = mu_pad.shape[0]
    mu_sq = jnp.sum(mu_pad * mu_pad, axis=1)[None, :]          # (1, Kp) precomputed once
    kern = functools.partial(combine_q_kernel, v=float(v), n_clusters=int(n_clusters))
    return pl.pallas_call(
        kern,
        out_shape=(jax.ShapeDtypeStruct((npad, d), jnp.float32),
                   jax.ShapeDtypeStruct((npad, kp), jnp.float32)),
        grid=(npad // tm,),
        in_specs=[
            pl.BlockSpec((e, tm, d), lambda i: (0, i, 0)),
            pl.BlockSpec((e, 1, d), lambda i: (0, 0, 0)),
            pl.BlockSpec((kp, d), lambda i: (0, 0)),
            pl.BlockSpec((1, kp), lambda i: (0, 0)),
        ],
        out_specs=(pl.BlockSpec((tm, d), lambda i: (i, 0)),
                   pl.BlockSpec((tm, kp), lambda i: (i, 0))),
        compiler_params=pltpu.CompilerParams(
            dimension_semantics=("parallel",),
            vmem_limit_bytes=VMEM_LIMIT),
    )(z_stack, fuse_w, mu_pad, mu_sq)


# ---------------------------------------------------------------------------
# Parameter initialization (mirrors the shapes in __init__)
# ---------------------------------------------------------------------------

def xavier_uniform(key, shape):
    fan_in, fan_out = shape[1], shape[0]
    limit = math.sqrt(6.0 / (fan_in + fan_out))
    return jax.random.uniform(key, shape, jnp.float32, minval=-limit, maxval=limit)


def init_params(key, n_input, enc1, enc2, enc3, n_clusters):
    keys = jax.random.split(key, 13)
    params = {}
    for i, name in enumerate(("topology", "geo", "text")):
        params[f"{name}_w1"] = xavier_uniform(keys[3 * i + 0], (n_input, enc1))
        params[f"{name}_w2"] = xavier_uniform(keys[3 * i + 1], (enc1, enc2))
        params[f"{name}_w3"] = xavier_uniform(keys[3 * i + 2], (enc2, enc3))
    params["cluster_layer"] = xavier_uniform(keys[9], (n_clusters, enc3))
    params["topology_weight"] = xavier_uniform(keys[10], (1, enc3))
    params["geo_weight"] = xavier_uniform(keys[11], (1, enc3))
    params["text_weight"] = xavier_uniform(keys[12], (1, enc3))
    return params


# ---------------------------------------------------------------------------
# Forward
# ---------------------------------------------------------------------------

def multi_attributed_forward(params, top_x, geo_x, text_x, adj_stack, v):
    """adj_stack = prepare_adjacency(top_adj, geo_adj, text_adj), computed once per graph."""
    n, f_in = top_x.shape
    e3 = params["topology_w3"].shape[1]
    k = params["cluster_layer"].shape[0]

    npad, tm, tk = _node_tiling(n)
    assert adj_stack.shape == (3, npad, npad), "adj_stack must come from prepare_adjacency()"

    fp = _round_up(f_in, LANE)
    e1p = _round_up(params["topology_w1"].shape[1], LANE)
    e2p = _round_up(params["topology_w2"].shape[1], LANE)
    e3p = _round_up(e3, LANE)
    kp = _round_up(k, LANE)

    x_stack3 = jnp.stack([_pad2(top_x, npad, fp), _pad2(geo_x, npad, fp),
                          _pad2(text_x, npad, fp)]).astype(jnp.bfloat16)

    def wstack(name, r, c):
        return jnp.stack([_pad2(params[f"topology_{name}"], r, c),
                          _pad2(params[f"geo_{name}"], r, c),
                          _pad2(params[f"text_{name}"], r, c)]).astype(jnp.bfloat16)

    w1 = wstack("w1", fp, e1p)
    w2 = wstack("w2", e1p, e2p)
    w3 = wstack("w3", e2p, e3p)
    fuse_w = jnp.stack([_pad2(params["topology_weight"], 1, e3p),
                        _pad2(params["geo_weight"], 1, e3p),
                        _pad2(params["text_weight"], 1, e3p)]).astype(jnp.float32)
    mu_pad = _pad2(params["cluster_layer"], kp, e3p).astype(jnp.float32)

    if npad <= SMALL_GRAPH_MAX_NODES:
        # adj-resident fast path: all three GCN layers in one launch; adj read from HBM once.
        z_stack = _small_graph_encode(x_stack3, adj_stack, w1, w2, w3, npad, jnp.bfloat16)
    else:
        # Tiled path: h = adj @ tanh(x @ W); next-layer transform fused into SpMM epilogue.
        x_flat = x_stack3.reshape(3 * npad, fp)
        h = _dense_act(x_flat, w1, npad, tm, jnp.bfloat16)                       # tanh(x @ W1)
        h = _spmm_fused(adj_stack, h, w2, npad, tm, tk, True, jnp.bfloat16)      # tanh((A@h)@W2)
        h = _spmm_fused(adj_stack, h, w3, npad, tm, tk, False, jnp.bfloat16)     # (A@h)@W3
        z_flat = _spmm_fused(adj_stack, h, None, npad, tm, tk, False, jnp.bfloat16)  # A@h
        z_stack = z_flat.reshape(3, npad, e3p)

    z_pad, q_pad = _combine_and_assign(z_stack, fuse_w, mu_pad, tm, v, k)
    return z_pad[:n, :e3], q_pad[:n, :k]


def multi_attributed_forward_raw(params, top_x, geo_x, text_x, top_adj, geo_adj, text_adj, v):
    """Convenience wrapper matching the torch forward signature (re-prepares adj every call)."""
    adj_stack = prepare_adjacency(top_adj, geo_adj, text_adj)
    return multi_attributed_forward(params, top_x, geo_x, text_x, adj_stack, v)


# ---------------------------------------------------------------------------
# Demo
# ---------------------------------------------------------------------------

if __name__ == "__main__":
    n_input = 32
    gae_n_enc_1, gae_n_enc_2, gae_n_enc_3 = 32, 32, 16
    n_clusters = 4
    v = 1.0

    root = jax.random.PRNGKey(0)
    k_params, k_data = jax.random.split(root)
    params = init_params(k_params, n_input, gae_n_enc_1, gae_n_enc_2, gae_n_enc_3, n_clusters)

    def make_adj(key, n):
        a = jax.random.uniform(key, (n, n), jnp.float32)
        a = a + jnp.eye(n, dtype=jnp.float32)               # self-loops
        return a / jnp.sum(a, axis=1, keepdims=True)         # row-normalized

    def run(n_nodes, seed):
        keys = jax.random.split(seed, 6)
        tx = jax.random.normal(keys[0], (n_nodes, n_input), jnp.float32)
        gx = jax.random.normal(keys[1], (n_nodes, n_input), jnp.float32)
        xx = jax.random.normal(keys[2], (n_nodes, n_input), jnp.float32)
        ta = make_adj(keys[3], n_nodes)
        ga = make_adj(keys[4], n_nodes)
        xa = make_adj(keys[5], n_nodes)
        adj_stack = jax.block_until_ready(prepare_adjacency(ta, ga, xa))  # once per graph
        z, q = multi_attributed_forward(params, tx, gx, xx, adj_stack, v)
        z = jax.block_until_ready(z)
        q = jax.block_until_ready(q)
        assert z.shape == (n_nodes, gae_n_enc_3)
        assert q.shape == (n_nodes, n_clusters)
        assert bool(jnp.all(jnp.isfinite(z)))
        assert bool(jnp.all(jnp.isfinite(q)))
        assert bool(jnp.allclose(jnp.sum(q, axis=1), 1.0, atol=1e-3))     # exact renormalize
        return z, q

    run(16, jax.random.fold_in(k_data, 0))      # tiny graph: adj-resident single-kernel path
    run(300, jax.random.fold_in(k_data, 1))     # small graph: adj-resident single-kernel path
    run(1200, jax.random.fold_in(k_data, 2))    # large graph: tiled path (resident H, fused
                                                # epilogue, 512x512 adj tiles, flattened grid)

    print("KERNEL_OK")
</pallas_src>

<mosaic_0001>
module attributes {stable_mosaic.version = 11 : i64} {
  func.func @small_graph_encoder_kernel(%arg0: i32, %arg1: memref<1x16x128xbf16, #tpu.memory_space<vmem>>, %arg2: memref<1x16x16xbf16, #tpu.memory_space<vmem>>, %arg3: memref<1x128x128xbf16, #tpu.memory_space<vmem>>, %arg4: memref<1x128x128xbf16, #tpu.memory_space<vmem>>, %arg5: memref<1x128x128xbf16, #tpu.memory_space<vmem>>, %arg6: memref<1x16x128xbf16, #tpu.memory_space<vmem>>) attributes {dimension_semantics = [#tpu.dimension_semantics<parallel>], iteration_bounds = array<i64: 3>, scalar_prefetch = 0 : i64, scratch_operands = 0 : i64, tpu.core_type = #tpu.core_type<tc>, window_params = [{transform_indices = @transform_0, window_bounds = array<i64: 1, 16, 128>}, {transform_indices = @transform_1, window_bounds = array<i64: 1, 16, 16>}, {transform_indices = @transform_2, window_bounds = array<i64: 1, 128, 128>}, {transform_indices = @transform_3, window_bounds = array<i64: 1, 128, 128>}, {transform_indices = @transform_4, window_bounds = array<i64: 1, 128, 128>}, {transform_indices = @transform_5, window_bounds = array<i64: 1, 16, 128>}]} {
    %c0 = arith.constant 0 : index
    %c0_0 = arith.constant 0 : index
    %c0_1 = arith.constant 0 : index
    %0 = vector.load %arg2[%c0, %c0_0, %c0_1] : memref<1x16x16xbf16, #tpu.memory_space<vmem>>, vector<1x16x16xbf16>
    %1 = vector.shape_cast %0 : vector<1x16x16xbf16> to vector<16x16xbf16>
    %c0_2 = arith.constant 0 : index
    %c0_3 = arith.constant 0 : index
    %c0_4 = arith.constant 0 : index
    %2 = vector.load %arg1[%c0_2, %c0_3, %c0_4] : memref<1x16x128xbf16, #tpu.memory_space<vmem>>, vector<1x16x128xbf16>
    %3 = vector.shape_cast %2 : vector<1x16x128xbf16> to vector<16x128xbf16>
    %c0_5 = arith.constant 0 : index
    %c0_6 = arith.constant 0 : index
    %c0_7 = arith.constant 0 : index
    %4 = vector.load %arg3[%c0_5, %c0_6, %c0_7] : memref<1x128x128xbf16, #tpu.memory_space<vmem>>, vector<1x128x128xbf16>
    %5 = vector.shape_cast %4 : vector<1x128x128xbf16> to vector<128x128xbf16>
    %cst = arith.constant dense<0.000000e+00> : vector<16x128xf32>
    %6 = tpu.matmul %3, %5, %cst {dimension_numbers = #tpu.dot_dimension_numbers<[1], [0], [0], [1], [0, 0, 1, 1], [], []>} : vector<16x128xbf16>, vector<128x128xbf16>, vector<16x128xf32> -> vector<16x128xf32>
    %7 = math.tanh %6 : vector<16x128xf32>
    %8 = arith.truncf %7 : vector<16x128xf32> to vector<16x128xbf16>
    %cst_8 = arith.constant dense<0.000000e+00> : vector<16x128xf32>
    %9 = tpu.matmul %1, %8, %cst_8 {dimension_numbers = #tpu.dot_dimension_numbers<[1], [0], [0], [1], [0, 0, 1, 1], [], []>} : vector<16x16xbf16>, vector<16x128xbf16>, vector<16x128xf32> -> vector<16x128xf32>
    %10 = arith.truncf %9 : vector<16x128xf32> to vector<16x128xbf16>
    %c0_9 = arith.constant 0 : index
    %c0_10 = arith.constant 0 : index
    %c0_11 = arith.constant 0 : index
    %11 = vector.load %arg4[%c0_9, %c0_10, %c0_11] : memref<1x128x128xbf16, #tpu.memory_space<vmem>>, vector<1x128x128xbf16>
    %12 = vector.shape_cast %11 : vector<1x128x128xbf16> to vector<128x128xbf16>
    %cst_12 = arith.constant dense<0.000000e+00> : vector<16x128xf32>
    %13 = tpu.matmul %10, %12, %cst_12 {dimension_numbers = #tpu.dot_dimension_numbers<[1], [0], [0], [1], [0, 0, 1, 1], [], []>} : vector<16x128xbf16>, vector<128x128xbf16>, vector<16x128xf32> -> vector<16x128xf32>
    %14 = math.tanh %13 : vector<16x128xf32>
    %15 = arith.truncf %14 : vector<16x128xf32> to vector<16x128xbf16>
    %cst_13 = arith.constant dense<0.000000e+00> : vector<16x128xf32>
    %16 = tpu.matmul %1, %15, %cst_13 {dimension_numbers = #tpu.dot_dimension_numbers<[1], [0], [0], [1], [0, 0, 1, 1], [], []>} : vector<16x16xbf16>, vector<16x128xbf16>, vector<16x128xf32> -> vector<16x128xf32>
    %17 = arith.truncf %16 : vector<16x128xf32> to vector<16x128xbf16>
    %c0_14 = arith.constant 0 : index
    %c0_15 = arith.constant 0 : index
    %c0_16 = arith.constant 0 : index
    %18 = vector.load %arg5[%c0_14, %c0_15, %c0_16] : memref<1x128x128xbf16, #tpu.memory_space<vmem>>, vector<1x128x128xbf16>
    %19 = vector.shape_cast %18 : vector<1x128x128xbf16> to vector<128x128xbf16>
    %cst_17 = arith.constant dense<0.000000e+00> : vector<16x128xf32>
    %20 = tpu.matmul %17, %19, %cst_17 {dimension_numbers = #tpu.dot_dimension_numbers<[1], [0], [0], [1], [0, 0, 1, 1], [], []>} : vector<16x128xbf16>, vector<128x128xbf16>, vector<16x128xf32> -> vector<16x128xf32>
    %21 = arith.truncf %20 : vector<16x128xf32> to vector<16x128xbf16>
    %cst_18 = arith.constant dense<0.000000e+00> : vector<16x128xf32>
    %22 = tpu.matmul %1, %21, %cst_18 {dimension_numbers = #tpu.dot_dimension_numbers<[1], [0], [0], [1], [0, 0, 1, 1], [], []>} : vector<16x16xbf16>, vector<16x128xbf16>, vector<16x128xf32> -> vector<16x128xf32>
    %23 = arith.truncf %22 : vector<16x128xf32> to vector<16x128xbf16>
    %c0_19 = arith.constant 0 : index
    %c0_20 = arith.constant 0 : index
    %c0_21 = arith.constant 0 : index
    %24 = vector.load %arg6[%c0_19, %c0_20, %c0_21] : memref<1x16x128xbf16, #tpu.memory_space<vmem>>, vector<1x16x128xbf16>
    %25 = vector.shape_cast %24 : vector<1x16x128xbf16> to vector<16x128xbf16>
    %26 = vector.shape_cast %23 : vector<16x128xbf16> to vector<1x16x128xbf16>
    tpu.vector_store %arg6[%c0_19, %c0_20, %c0_21], %26 {strides = array<i32>} : memref<1x16x128xbf16, #tpu.memory_space<vmem>>, vector<1x16x128xbf16>,
    return
  }
  func.func @transform_0(%arg0: i32) -> (i32, i32, i32) {
    %c0_i32 = arith.constant 0 : i32
    %c0_i32_0 = arith.constant 0 : i32
    %c0_i32_1 = arith.constant 0 : i32
    return %arg0, %c0_i32, %c0_i32_0 : i32, i32, i32
  }
  func.func @transform_1(%arg0: i32) -> (i32, i32, i32) {
    %c0_i32 = arith.constant 0 : i32
    %c0_i32_0 = arith.constant 0 : i32
    %c0_i32_1 = arith.constant 0 : i32
    return %arg0, %c0_i32, %c0_i32_0 : i32, i32, i32
  }
  func.func @transform_2(%arg0: i32) -> (i32, i32, i32) {
    %c0_i32 = arith.constant 0 : i32
    %c0_i32_0 = arith.constant 0 : i32
    %c0_i32_1 = arith.constant 0 : i32
    return %arg0, %c0_i32, %c0_i32_0 : i32, i32, i32
  }
  func.func @transform_3(%arg0: i32) -> (i32, i32, i32) {
    %c0_i32 = arith.constant 0 : i32
    %c0_i32_0 = arith.constant 0 : i32
    %c0_i32_1 = arith.constant 0 : i32
    return %arg0, %c0_i32, %c0_i32_0 : i32, i32, i32
  }
  func.func @transform_4(%arg0: i32) -> (i32, i32, i32) {
    %c0_i32 = arith.constant 0 : i32
    %c0_i32_0 = arith.constant 0 : i32
    %c0_i32_1 = arith.constant 0 : i32
    return %arg0, %c0_i32, %c0_i32_0 : i32, i32, i32
  }
  func.func @transform_5(%arg0: i32) -> (i32, i32, i32) {
    %c0_i32 = arith.constant 0 : i32
    %c0_i32_0 = arith.constant 0 : i32
    %c0_i32_1 = arith.constant 0 : i32
    return %arg0, %c0_i32, %c0_i32_0 : i32, i32, i32
  }
}

</mosaic_0001>

<llo_original>
// kernel: tpu_custom_call.1
$region0: #{tpu_custom_call.1}
  #allocation0 [shape = 'u32[]', space=smem, size = 0x4, offset = 0x4, fixed_abs, tag = 'smem constant byte address 0x4 - core index']
  #allocation1 [shape = 'u32[144,128]{1,0:T(1,128)}', space=vmem, size = 0x12000, scoped, tag = 'internal scratch']
  %s0 = inlined_call_operand.hbm [shape: bf16[3,16,128], index: 0, kind: input, shape index: {}]
  %s1 = inlined_call_operand.hbm [shape: bf16[3,16,16], index: 1, kind: input, shape index: {}]
  %s2 = inlined_call_operand.hbm [shape: bf16[3,128,128], index: 2, kind: input, shape index: {}]
  %s3 = inlined_call_operand.hbm [shape: bf16[3,128,128], index: 3, kind: input, shape index: {}]
  %s4 = inlined_call_operand.hbm [shape: bf16[3,128,128], index: 4, kind: input, shape index: {}]
  %s5 = inlined_call_operand.hbm [shape: bf16[3,16,128], index: 5, kind: output, shape index: {}]
  %s6 = sld [smem:[#allocation0]]
  $region73: #{tpu_custom_call.1} parent=0
    _
  %s8 = ssub.s32 1, %s6
  %s9 = scalar_select 0, %s8, %s6
  $region1: #{tpu_custom_call.1} parent=0
    #allocation2 [shape = 'u8[8192]{0}', space=vmem, size = 0x2000, scoped, tag = 'input window, operand 0']
    #allocation3 [shape = 's32[2]{0}', space=sflag, size = 0x8, scoped, tag = 'scoped memory for tpu_custom_call.1']
    #allocation4 [shape = 's32[2]{0}', space=sflag, size = 0x8, scoped, tag = 'scoped memory for tpu_custom_call.1']
    #allocation5 [shape = 'u8[8192]{0}', space=vmem, size = 0x2000, scoped, tag = 'input window, operand 1']
    #allocation6 [shape = 's32[2]{0}', space=sflag, size = 0x8, scoped, tag = 'scoped memory for tpu_custom_call.1']
    #allocation7 [shape = 'u8[65536]{0}', space=vmem, size = 0x10000, scoped, tag = 'input window, operand 2']
    #allocation8 [shape = 'u8[65536]{0}', space=vmem, size = 0x10000, scoped, tag = 'input window, operand 3']
    #allocation9 [shape = 's32[2]{0}', space=sflag, size = 0x8, scoped, tag = 'scoped memory for tpu_custom_call.1']
    #allocation10 [shape = 'u8[65536]{0}', space=vmem, size = 0x10000, scoped, tag = 'input window, operand 4']
    #allocation11 [shape = 'u8[8192]{0}', space=vmem, size = 0x2000, scoped, tag = 'output window, operand 0']
    %10 = vsyncpa [#allocation3], 0
    %s11 = scalar_lea.sflag [#allocation3], 1
    %12 = vsyncpa %s11, 0
    %13 = vsyncpa [#allocation6], 0
    %s14 = scalar_lea.sflag [#allocation6], 1
    %15 = vsyncpa %s14, 0
    %16 = vsyncpa [#allocation9], 0
    %s17 = scalar_lea.sflag [#allocation9], 1
    %18 = vsyncpa %s17, 0
    %19 = vsyncpa [#allocation4], 0
    %s20 = scalar_lea.sflag [#allocation4], 1
    %21 = vsyncpa %s20, 0
    loop: start=0, step=1, limit=5
    $region2: #{tpu_custom_call.1} parent=1 // loop_pre_header
      _
    $region3: #{tpu_custom_call.1} parent=1 // loop_header
      %s23 = sphi 0, %s27
      %p24 = scmp.ge.s32.totalorder %s23, 5
      %s33 = sphi 0, %s35
      %s36 = sphi 0, %s33
      %s37 = sphi 0, %s36
      %s53 = sphi 0, %s37
      %s59 = sphi 0, %s61
      %s62 = sphi 0, %s59
      %s63 = sphi 0, %s62
      %s79 = sphi 0, %s63
      %s85 = sphi 0, %s87
      %s88 = sphi 0, %s85
      %s89 = sphi 0, %s88
      %s105 = sphi 0, %s89
      %s111 = sphi 0, %s113
      %s114 = sphi 0, %s111
      %s115 = sphi 0, %s114
      %s131 = sphi 0, %s115
      %s137 = sphi 0, %s139
      %s140 = sphi 0, %s137
      %s141 = sphi 0, %s140
      %s157 = sphi 0, %s141
      %s163 = sphi 0, %s165
      %s166 = sphi 0, %s163
      %s167 = sphi 0, %s166
      %s183 = sphi 0, %s167
    $region4: #{tpu_custom_call.1} parent=1 // loop_header_branch
      %26 = sbr.rel (%p24) target = $region8
    $region5: #{tpu_custom_call.1} parent=1 // loop_body
      %s28 = ssub.s32 %s23, 1
      %s29 = ssub.s32 %s23, 2
      %s30 = sadd.s32 %s23, 1
      %s31 = ssub.s32 %s23, %s30
      %p32 = scmp.eq.s32.totalorder %s31, 0
      %s34 = sadd.s32 %s33, 1
      %s35 = scalar_select %p32, %s33, %s34
      %p38 = pneg %p32
      %p39 = scmp.eq.s32.totalorder %s23, 2
      %p40 = por %p38, %p39
      %p41 = scmp.ne.s32.totalorder %s33, %s36
      %p42 = scmp.eq.s32.totalorder %s23, 0
      %p43 = por %p41, %p42
      %p44 = scmp.ne.s32.totalorder %s33, %s36
      %p45 = scmp.eq.s32.totalorder %s28, 2
      %p46 = por %p44, %p45
      %p47 = scmp.ne.s32.totalorder %s36, %s37
      %p48 = scmp.eq.s32.totalorder %s28, 0
      %p49 = por %p47, %p48
      %p50 = scmp.ne.s32.totalorder %s36, %s37
      %p51 = scmp.eq.s32.totalorder %s29, 2
      %p52 = por %p50, %p51
      %p54 = scmp.ne.s32.totalorder %s37, %s53
      %p55 = scmp.eq.s32.totalorder %s29, 0
      %p56 = por %p54, %p55
      %s57 = ssub.s32 %s23, %s30
      %p58 = scmp.eq.s32.totalorder %s57, 0
      %s60 = sadd.s32 %s59, 1
      %s61 = scalar_select %p58, %s59, %s60
      %p64 = pneg %p58
      %p65 = scmp.eq.s32.totalorder %s23, 2
      %p66 = por %p64, %p65
      %p67 = scmp.ne.s32.totalorder %s59, %s62
      %p68 = scmp.eq.s32.totalorder %s23, 0
      %p69 = por %p67, %p68
      %p70 = scmp.ne.s32.totalorder %s59, %s62
      %p71 = scmp.eq.s32.totalorder %s28, 2
      %p72 = por %p70, %p71
      %p73 = scmp.ne.s32.totalorder %s62, %s63
      %p74 = scmp.eq.s32.totalorder %s28, 0
      %p75 = por %p73, %p74
      %p76 = scmp.ne.s32.totalorder %s62, %s63
      %p77 = scmp.eq.s32.totalorder %s29, 2
      %p78 = por %p76, %p77
      %p80 = scmp.ne.s32.totalorder %s63, %s79
      %p81 = scmp.eq.s32.totalorder %s29, 0
      %p82 = por %p80, %p81
      %s83 = ssub.s32 %s23, %s30
      %p84 = scmp.eq.s32.totalorder %s83, 0
      %s86 = sadd.s32 %s85, 1
      %s87 = scalar_select %p84, %s85, %s86
      %p90 = pneg %p84
      %p91 = scmp.eq.s32.totalorder %s23, 2
      %p92 = por %p90, %p91
      %p93 = scmp.ne.s32.totalorder %s85, %s88
      %p94 = scmp.eq.s32.totalorder %s23, 0
      %p95 = por %p93, %p94
      %p96 = scmp.ne.s32.totalorder %s85, %s88
      %p97 = scmp.eq.s32.totalorder %s28, 2
      %p98 = por %p96, %p97
      %p99 = scmp.ne.s32.totalorder %s88, %s89
      %p100 = scmp.eq.s32.totalorder %s28, 0
      %p101 = por %p99, %p100
      %p102 = scmp.ne.s32.totalorder %s88, %s89
      %p103 = scmp.eq.s32.totalorder %s29, 2
      %p104 = por %p102, %p103
      %p106 = scmp.ne.s32.totalorder %s89, %s105
      %p107 = scmp.eq.s32.totalorder %s29, 0
      %p108 = por %p106, %p107
      %s109 = ssub.s32 %s23, %s30
      %p110 = scmp.eq.s32.totalorder %s109, 0
      %s112 = sadd.s32 %s111, 1
      %s113 = scalar_select %p110, %s111, %s112
      %p116 = pneg %p110
      %p117 = scmp.eq.s32.totalorder %s23, 2
      %p118 = por %p116, %p117
      %p119 = scmp.ne.s32.totalorder %s111, %s114
      %p120 = scmp.eq.s32.totalorder %s23, 0
      %p121 = por %p119, %p120
      %p122 = scmp.ne.s32.totalorder %s111, %s114
      %p123 = scmp.eq.s32.totalorder %s28, 2
      %p124 = por %p122, %p123
      %p125 = scmp.ne.s32.totalorder %s114, %s115
      %p126 = scmp.eq.s32.totalorder %s28, 0
      %p127 = por %p125, %p126
      %p128 = scmp.ne.s32.totalorder %s114, %s115
      %p129 = scmp.eq.s32.totalorder %s29, 2
      %p130 = por %p128, %p129
      %p132 = scmp.ne.s32.totalorder %s115, %s131
      %p133 = scmp.eq.s32.totalorder %s29, 0
      %p134 = por %p132, %p133
      %s135 = ssub.s32 %s23, %s30
      %p136 = scmp.eq.s32.totalorder %s135, 0
      %s138 = sadd.s32 %s137, 1
      %s139 = scalar_select %p136, %s137, %s138
      %p142 = pneg %p136
      %p143 = scmp.eq.s32.totalorder %s23, 2
      %p144 = por %p142, %p143
      %p145 = scmp.ne.s32.totalorder %s137, %s140
      %p146 = scmp.eq.s32.totalorder %s23, 0
      %p147 = por %p145, %p146
      %p148 = scmp.ne.s32.totalorder %s137, %s140
      %p149 = scmp.eq.s32.totalorder %s28, 2
      %p150 = por %p148, %p149
      %p151 = scmp.ne.s32.totalorder %s140, %s141
      %p152 = scmp.eq.s32.totalorder %s28, 0
      %p153 = por %p151, %p152
      %p154 = scmp.ne.s32.totalorder %s140, %s141
      %p155 = scmp.eq.s32.totalorder %s29, 2
      %p156 = por %p154, %p155
      %p158 = scmp.ne.s32.totalorder %s141, %s157
      %p159 = scmp.eq.s32.totalorder %s29, 0
      %p160 = por %p158, %p159
      %s161 = ssub.s32 %s23, %s30
      %p162 = scmp.eq.s32.totalorder %s161, 0
      %s164 = sadd.s32 %s163, 1
      %s165 = scalar_select %p162, %s163, %s164
      %p168 = pneg %p162
      %p169 = scmp.eq.s32.totalorder %s23, 2
      %p170 = por %p168, %p169
      %p171 = scmp.ne.s32.totalorder %s163, %s166
      %p172 = scmp.eq.s32.totalorder %s23, 0
      %p173 = por %p171, %p172
      %p174 = scmp.ne.s32.totalorder %s163, %s166
      %p175 = scmp.eq.s32.totalorder %s28, 2
      %p176 = por %p174, %p175
      %p177 = scmp.ne.s32.totalorder %s166, %s167
      %p178 = scmp.eq.s32.totalorder %s28, 0
      %p179 = por %p177, %p178
      %p180 = scmp.ne.s32.totalorder %s166, %s167
      %p181 = scmp.eq.s32.totalorder %s29, 2
      %p182 = por %p180, %p181
      %p184 = scmp.ne.s32.totalorder %s167, %s183
      %p185 = scmp.eq.s32.totalorder %s29, 0
      %p186 = por %p184, %p185
      %p187 = scmp.le.s32.totalorder 1, %s23
      %p188 = scmp.lt.s32.totalorder %s23, 4
      %p189 = pnand %p187, %p188
      %p190 = pneg %p189
      // Predicated region
      $region9: #{tpu_custom_call.1} parent=5 // pred_check
        _
      $region10: #{tpu_custom_call.1} parent=5 // pred_check_branch
        %192 = sbr.rel (%p189) target = $region12
      $region11: #{tpu_custom_call.1} parent=5 // pred_region
        %s193 = ssub.s32 %s23, 1
      $region12: #{tpu_custom_call.1} parent=5 // pred_fallthru
        _
      %p194 = scmp.lt.s32.totalorder %s23, 3
      // Predicated region
      $region13: #{tpu_custom_call.1} parent=5 // pred_check
        %p195 = pneg %p194
      $region14: #{tpu_custom_call.1} parent=5 // pred_check_branch
        %197 = sbr.rel (%p195) target = $region16
      $region15: #{tpu_custom_call.1} parent=5 // pred_region
        // Predicated region
        $region17: #{tpu_custom_call.1} parent=15 // pred_check
          %p198 = pneg %p43
        $region18: #{tpu_custom_call.1} parent=15 // pred_check_branch
          %200 = sbr.rel (%p198) target = $region20
        $region19: #{tpu_custom_call.1} parent=15 // pred_region
          %s201 = sand.u32 %s33, 1
          %s202 = scalar_lea.sflag [#allocation3], %s201
          %s203 = sand.u32 %s33, 1
          %s204 = smul.addr %s203, 8
          %s205 = scalar_lea.vmem [#allocation2], %s204
          %s207 = ssub.s32 128, 128
          %208 = vsyncadd %s202, %s207
          %s209 = smul.addr %s23, 2
          %s210 = smul.addr %s209, 64
          %s211 = scalar_lea.hbm %s0, %s210
          %s212 = sshll.u32 %s205, 4
          %s213 = int_to_ptr.vmem [resolvable:$true] %s212
          %218 = dma.hbm_to_vmem [thread:$0]  %s211, 128, %s213, %s202, 64, 64, 4
        $region20: #{tpu_custom_call.1} parent=15 // pred_fallthru
          _
        // Predicated region
        $region21: #{tpu_custom_call.1} parent=15 // pred_check
          %p219 = pneg %p69
        $region22: #{tpu_custom_call.1} parent=15 // pred_check_branch
          %221 = sbr.rel (%p219) target = $region24
        $region23: #{tpu_custom_call.1} parent=15 // pred_region
          %s222 = sand.u32 %s23, 1
          %s223 = scalar_lea.sflag [#allocation6], %s222
          %s224 = sand.u32 %s59, 1
          %s225 = smul.addr %s224, 8
          %s226 = scalar_lea.vmem [#allocation5], %s225
          %s228 = ssub.s32 128, 128
          %229 = vsyncadd %s223, %s228
          %s230 = smul.addr %s23, 2
          %s231 = smul.addr %s230, 64
          %s232 = scalar_lea.hbm %s1, %s231
          %s233 = sshll.u32 %s226, 4
          %s234 = int_to_ptr.vmem [resolvable:$true] %s233
          %239 = dma.hbm_to_vmem [thread:$0]  %s232, 128, %s234, %s223, 64, 64, 4
        $region24: #{tpu_custom_call.1} parent=15 // pred_fallthru
          _
        // Predicated region
        $region25: #{tpu_custom_call.1} parent=15 // pred_check
          %p240 = pneg %p95
        $region26: #{tpu_custom_call.1} parent=15 // pred_check_branch
          %242 = sbr.rel (%p240) target = $region28
        $region27: #{tpu_custom_call.1} parent=15 // pred_region
          %s243 = sand.u32 %s23, 1
          %s244 = scalar_lea.sflag [#allocation6], %s243
          %s245 = sand.u32 %s85, 1
          %s246 = smul.addr %s245, 64
          %s247 = scalar_lea.vmem [#allocation7], %s246
          %s249 = ssub.s32 1024, 1024
          %250 = vsyncadd %s244, %s249
          %s251 = smul.addr %s23, 16
          %s252 = smul.addr %s251, 64
          %s253 = scalar_lea.hbm %s2, %s252
          %s254 = sshll.u32 %s247, 4
          %s255 = int_to_ptr.vmem [resolvable:$true] %s254
          %260 = dma.hbm_to_vmem [thread:$0]  %s253, 1024, %s255, %s244, 64, 64, 4
        $region28: #{tpu_custom_call.1} parent=15 // pred_fallthru
          _
        // Predicated region
        $region29: #{tpu_custom_call.1} parent=15 // pred_check
          %p261 = pneg %p121
        $region30: #{tpu_custom_call.1} parent=15 // pred_check_branch
          %263 = sbr.rel (%p261) target = $region32
        $region31: #{tpu_custom_call.1} parent=15 // pred_region
          %s264 = sand.u32 %s23, 1
          %s265 = scalar_lea.sflag [#allocation9], %s264
          %s266 = sand.u32 %s111, 1
          %s267 = smul.addr %s266, 64
          %s268 = scalar_lea.vmem [#allocation8], %s267
          %s270 = ssub.s32 1024, 1024
          %271 = vsyncadd %s265, %s270
          %s272 = smul.addr %s23, 16
          %s273 = smul.addr %s272, 64
          %s274 = scalar_lea.hbm %s3, %s273
          %s275 = sshll.u32 %s268, 4
          %s276 = int_to_ptr.vmem [resolvable:$true] %s275
          %281 = dma.hbm_to_vmem [thread:$0]  %s274, 1024, %s276, %s265, 64, 64, 4
        $region32: #{tpu_custom_call.1} parent=15 // pred_fallthru
          _
        // Predicated region
        $region33: #{tpu_custom_call.1} parent=15 // pred_check
          %p282 = pneg %p147
        $region34: #{tpu_custom_call.1} parent=15 // pred_check_branch
          %284 = sbr.rel (%p282) target = $region36
        $region35: #{tpu_custom_call.1} parent=15 // pred_region
          %s285 = sand.u32 %s23, 1
          %s286 = scalar_lea.sflag [#allocation9], %s285
          %s287 = sand.u32 %s137, 1
          %s288 = smul.addr %s287, 64
          %s289 = scalar_lea.vmem [#allocation10], %s288
          %s291 = ssub.s32 1024, 1024
          %292 = vsyncadd %s286, %s291
          %s293 = smul.addr %s23, 16
          %s294 = smul.addr %s293, 64
          %s295 = scalar_lea.hbm %s4, %s294
          %s296 = sshll.u32 %s289, 4
          %s297 = int_to_ptr.vmem [resolvable:$true] %s296
          %302 = dma.hbm_to_vmem [thread:$0]  %s295, 1024, %s297, %s286, 64, 64, 4
        $region36: #{tpu_custom_call.1} parent=15 // pred_fallthru
          _
      $region16: #{tpu_custom_call.1} parent=5 // pred_fallthru
        _
      %p303 = scmp.le.s32.totalorder 1, %s23
      %p304 = scmp.lt.s32.totalorder %s23, 4
      %p305 = pnand %p303, %p304
      %p306 = pneg %p305
      // Predicated region
      $region37: #{tpu_custom_call.1} parent=5 // pred_check
        _
      $region38: #{tpu_custom_call.1} parent=5 // pred_check_branch
        %308 = sbr.rel (%p305) target = $region40
      $region39: #{tpu_custom_call.1} parent=5 // pred_region
        %s309 = ssub.s32 %s23, 1
        %s310 = sand.u32 %s36, 1
        %s311 = scalar_lea.sflag [#allocation3], %s310
        %s312 = sand.u32 %s36, 1
        %s313 = smul.addr %s312, 8
        %s314 = scalar_lea.vmem [#allocation2], %s313
        // Predicated region
        $region41: #{tpu_custom_call.1} parent=39 // pred_check
          %p315 = pneg %p49
        $region42: #{tpu_custom_call.1} parent=39 // pred_check_branch
          %317 = sbr.rel (%p315) target = $region44
        $region43: #{tpu_custom_call.1} parent=39 // pred_region
          %318 = dma.done %s311, 128
        $region44: #{tpu_custom_call.1} parent=39 // pred_fallthru
          _
        %s319 = sand.u32 %s28, 1
        %s320 = scalar_lea.sflag [#allocation6], %s319
        %s321 = sand.u32 %s62, 1
        %s322 = smul.addr %s321, 8
        %s323 = scalar_lea.vmem [#allocation5], %s322
        // Predicated region
        $region45: #{tpu_custom_call.1} parent=39 // pred_check
          %p324 = pneg %p75
        $region46: #{tpu_custom_call.1} parent=39 // pred_check_branch
          %326 = sbr.rel (%p324) target = $region48
        $region47: #{tpu_custom_call.1} parent=39 // pred_region
          %327 = dma.done %s320, 128
        $region48: #{tpu_custom_call.1} parent=39 // pred_fallthru
          _
        %s328 = sand.u32 %s28, 1
        %s329 = scalar_lea.sflag [#allocation6], %s328
        %s330 = sand.u32 %s88, 1
        %s331 = smul.addr %s330, 64
        %s332 = scalar_lea.vmem [#allocation7], %s331
        // Predicated region
        $region49: #{tpu_custom_call.1} parent=39 // pred_check
          %p333 = pneg %p101
        $region50: #{tpu_custom_call.1} parent=39 // pred_check_branch
          %335 = sbr.rel (%p333) target = $region52
        $region51: #{tpu_custom_call.1} parent=39 // pred_region
          %336 = dma.done %s329, 1024
        $region52: #{tpu_custom_call.1} parent=39 // pred_fallthru
          _
        %s337 = sand.u32 %s28, 1
        %s338 = scalar_lea.sflag [#allocation9], %s337
        %s339 = sand.u32 %s114, 1
        %s340 = smul.addr %s339, 64
        %s341 = scalar_lea.vmem [#allocation8], %s340
        // Predicated region
        $region53: #{tpu_custom_call.1} parent=39 // pred_check
          %p342 = pneg %p127
        $region54: #{tpu_custom_call.1} parent=39 // pred_check_branch
          %344 = sbr.rel (%p342) target = $region56
        $region55: #{tpu_custom_call.1} parent=39 // pred_region
          %345 = dma.done %s338, 1024
        $region56: #{tpu_custom_call.1} parent=39 // pred_fallthru
          _
        %s346 = sand.u32 %s28, 1
        %s347 = scalar_lea.sflag [#allocation9], %s346
        %s348 = sand.u32 %s140, 1
        %s349 = smul.addr %s348, 64
        %s350 = scalar_lea.vmem [#allocation10], %s349
        // Predicated region
        $region57: #{tpu_custom_call.1} parent=39 // pred_check
          %p351 = pneg %p153
        $region58: #{tpu_custom_call.1} parent=39 // pred_check_branch
          %353 = sbr.rel (%p351) target = $region60
        $region59: #{tpu_custom_call.1} parent=39 // pred_region
          %354 = dma.done %s347, 1024
        $region60: #{tpu_custom_call.1} parent=39 // pred_fallthru
          _
        %s355 = sand.u32 %s36, 1
        %s356 = scalar_lea.sflag [#allocation3], %s355
        %s357 = sand.u32 %s36, 1
        %s358 = smul.addr %s357, 8
        %s359 = scalar_lea.vmem [#allocation2], %s358
        %p360 = pneg %p49
        %p361 = pneg %p46
        %s362 = sand.u32 %s28, 1
        %s363 = scalar_lea.sflag [#allocation6], %s362
        %s364 = sand.u32 %s62, 1
        %s365 = smul.addr %s364, 8
        %s366 = scalar_lea.vmem [#allocation5], %s365
        %p367 = pneg %p75
        %p368 = pneg %p72
        %s369 = sand.u32 %s28, 1
        %s370 = scalar_lea.sflag [#allocation6], %s369
        %s371 = sand.u32 %s88, 1
        %s372 = smul.addr %s371, 64
        %s373 = scalar_lea.vmem [#allocation7], %s372
        %p374 = pneg %p101
        %p375 = pneg %p98
        %s376 = sand.u32 %s28, 1
        %s377 = scalar_lea.sflag [#allocation9], %s376
        %s378 = sand.u32 %s114, 1
        %s379 = smul.addr %s378, 64
        %s380 = scalar_lea.vmem [#allocation8], %s379
        %p381 = pneg %p127
        %p382 = pneg %p124
        %s383 = sand.u32 %s28, 1
        %s384 = scalar_lea.sflag [#allocation9], %s383
        %s385 = sand.u32 %s140, 1
        %s386 = smul.addr %s385, 64
        %s387 = scalar_lea.vmem [#allocation10], %s386
        %p388 = pneg %p153
        %p389 = pneg %p150
        %p390 = pneg %p179
        %p391 = pneg %p176
        %s392 = sand.u32 %s166, 1
        %s393 = scalar_lea.sflag [#allocation4], %s392
        %s394 = sand.u32 %s166, 1
        %s395 = smul.addr %s394, 8
        %s396 = scalar_lea.vmem [#allocation11], %s395
        %v398 = vld [vmem:[%s323] sm:$0xf]
        %v399 = vld [vmem:[%s323 + $0x4] sm:$0xf]
        %v400 = vld [vmem:[%s314] sm:$0xf]
        %v401 = vld [vmem:[%s314 + $0x4] sm:$0xf]
        %v402 = vld [vmem:[%s332] sm:$0xf]
        %v403 = vld [vmem:[%s332 + $0x4] sm:$0xf]
        %v404 = vld [vmem:[%s332 + $0x8] sm:$0xf]
        %v405 = vld [vmem:[%s332 + $0xc] sm:$0xf]
        %v406 = vld [vmem:[%s332 + $0x10] sm:$0xf]
        %v407 = vld [vmem:[%s332 + $0x14] sm:$0xf]
        %v408 = vld [vmem:[%s332 + $0x18] sm:$0xf]
        %v409 = vld [vmem:[%s332 + $0x1c] sm:$0xf]
        %v410 = vld [vmem:[%s332 + $0x20] sm:$0xf]
        %v411 = vld [vmem:[%s332 + $0x24] sm:$0xf]
        %v412 = vld [vmem:[%s332 + $0x28] sm:$0xf]
        %v413 = vld [vmem:[%s332 + $0x2c] sm:$0xf]
        %v414 = vld [vmem:[%s332 + $0x30] sm:$0xf]
        %v415 = vld [vmem:[%s332 + $0x34] sm:$0xf]
        %v416 = vld [vmem:[%s332 + $0x38] sm:$0xf]
        %v417 = vld [vmem:[%s332 + $0x3c] sm:$0xf]
        %v420 = vunpack.c.l.b16 %v400
        %v421 = vunpack.c.l.b16 %v401
        %v422 = vpack.c.b16 %v421, %v420
        %v440 = vunpack.c.l.b16 %v402
        %v441 = vunpack.c.l.b16 %v403
        %v442 = vunpack.c.l.b16 %v404
        %v443 = vunpack.c.l.b16 %v405
        %v444 = vunpack.c.l.b16 %v406
        %v445 = vunpack.c.l.b16 %v407
        %v446 = vunpack.c.l.b16 %v408
        %v447 = vunpack.c.l.b16 %v409
        %v448 = vunpack.c.l.b16 %v410
        %v449 = vunpack.c.l.b16 %v411
        %v450 = vunpack.c.l.b16 %v412
        %v451 = vunpack.c.l.b16 %v413
        %v452 = vunpack.c.l.b16 %v414
        %v453 = vunpack.c.l.b16 %v415
        %v454 = vunpack.c.l.b16 %v416
        %v455 = vunpack.c.l.b16 %v417
        %v456 = vpack.c.b16 %v441, %v440
        %v457 = vpack.c.b16 %v443, %v442
        %v458 = vpack.c.b16 %v445, %v444
        %v459 = vpack.c.b16 %v447, %v446
        %v460 = vpack.c.b16 %v449, %v448
        %v461 = vpack.c.b16 %v451, %v450
        %v462 = vpack.c.b16 %v453, %v452
        %v463 = vpack.c.b16 %v455, %v454
        %472 = vmatprep.subr.bf16.mxu0 0
        %473 = vmatpush1.bf16.msra.mxu0 %v456
        %474 = vmatprep.subr.bf16.mxu0 0
        %475 = vmatpush1.bf16.msra.mxu0 %v457
        %476 = vmatprep.subr.bf16.mxu0 0
        %477 = vmatpush1.bf16.msra.mxu0 %v458
        %478 = vmatprep.subr.bf16.mxu0 0
        %479 = vmatpush1.bf16.msra.mxu0 %v459
        %480 = vmatprep.subr.bf16.mxu0 0
        %481 = vmatpush1.bf16.msra.mxu0 %v460
        %482 = vmatprep.subr.bf16.mxu0 0
        %483 = vmatpush1.bf16.msra.mxu0 %v461
        %484 = vmatprep.subr.bf16.mxu0 0
        %485 = vmatpush1.bf16.msra.mxu0 %v462
        %486 = vmatprep.subr.bf16.mxu0 0
        %487 = vmatpush1.bf16.msra.mxu0 %v463
        %488 = vmatprep.subr.bf16.mxu0 0
        %489 = vmatpush1.bf16.msra.mxu0 0
        %490 = vmatprep.subr.bf16.mxu0 0
        %491 = vmatpush1.bf16.msra.mxu0 0
        %492 = vmatprep.subr.bf16.mxu0 0
        %493 = vmatpush1.bf16.msra.mxu0 0
        %494 = vmatprep.subr.bf16.mxu0 0
        %495 = vmatpush1.bf16.msra.mxu0 0
        %496 = vmatprep.subr.bf16.mxu0 0
        %497 = vmatpush1.bf16.msra.mxu0 0
        %498 = vmatprep.subr.bf16.mxu0 0
        %499 = vmatpush1.bf16.msra.mxu0 0
        %500 = vmatprep.subr.bf16.mxu0 0
        %501 = vmatpush1.bf16.msra.mxu0 0
        %502 = vmatprep.subr.bf16.mxu0 0
        %503 = vmatpush1.bf16.msra.mxu0 0
        %504 = vmatprep.mubr.bf16.mxu0 0
        %505 = vmatmul.mubr.bf16.gmra.mrb[0].mxu0 %v422
        %v506 = vpop.f32.mrb[0].mxu0
        %v507 = vadd.f32 0.0, %v506
        %v508 = vpop.f32.mrb[0].mxu0
        %v509 = vpop.f32.mrb[0].mxu0
        %v510 = vadd.f32 0.0, %v509
        %v511 = vpop.f32.mrb[0].mxu0
        %512 = vdwg.mxu0
        %v513 = vtanh.pop %v507
        %v514 = vtanh.pop %v510
        %v515 = vpack.c.bf16 %v514, %v513
        %v518 = vunpack.c.l.b16 %v398
        %v519 = vunpack.c.l.b16 %v399
        %v520 = vpack.c.b16 %v519, %v518
        %vm521 = vcmask 130048
        %v523 = vsel %vm521, %v520, 0
        %525 = vmatprep.subr.bf16.mxu0 0
        %526 = vmatpush1.bf16.msra.mxu0 %v515
        %527 = vmatprep.subr.bf16.mxu0 0
        %528 = vmatpush1.bf16.msra.mxu0 0
        %529 = vmatprep.subr.bf16.mxu0 0
        %530 = vmatpush1.bf16.msra.mxu0 0
        %531 = vmatprep.subr.bf16.mxu0 0
        %532 = vmatpush1.bf16.msra.mxu0 0
        %533 = vmatprep.subr.bf16.mxu0 0
        %534 = vmatpush1.bf16.msra.mxu0 0
        %535 = vmatprep.subr.bf16.mxu0 0
        %536 = vmatpush1.bf16.msra.mxu0 0
        %537 = vmatprep.subr.bf16.mxu0 0
        %538 = vmatpush1.bf16.msra.mxu0 0
        %539 = vmatprep.subr.bf16.mxu0 0
        %540 = vmatpush1.bf16.msra.mxu0 0
        %541 = vmatprep.subr.bf16.mxu0 0
        %542 = vmatpush1.bf16.msra.mxu0 0
        %543 = vmatprep.subr.bf16.mxu0 0
        %544 = vmatpush1.bf16.msra.mxu0 0
        %545 = vmatprep.subr.bf16.mxu0 0
        %546 = vmatpush1.bf16.msra.mxu0 0
        %547 = vmatprep.subr.bf16.mxu0 0
        %548 = vmatpush1.bf16.msra.mxu0 0
        %549 = vmatprep.subr.bf16.mxu0 0
        %550 = vmatpush1.bf16.msra.mxu0 0
        %551 = vmatprep.subr.bf16.mxu0 0
        %552 = vmatpush1.bf16.msra.mxu0 0
        %553 = vmatprep.subr.bf16.mxu0 0
        %554 = vmatpush1.bf16.msra.mxu0 0
        %555 = vmatprep.subr.bf16.mxu0 0
        %556 = vmatpush1.bf16.msra.mxu0 0
        %557 = vmatprep.mubr.bf16.mxu0 0
        %558 = vmatmul.mubr.bf16.gmra.mrb[0].mxu0 %v523
        %v559 = vpop.f32.mrb[0].mxu0
        %v560 = vadd.f32 0.0, %v559
        %v561 = vpop.f32.mrb[0].mxu0
        %v562 = vpop.f32.mrb[0].mxu0
        %v563 = vadd.f32 0.0, %v562
        %v564 = vpop.f32.mrb[0].mxu0
        %565 = vdwg.mxu0
        %v566 = vpack.c.bf16 %v563, %v560
        %v567 = vld [vmem:[%s341] sm:$0xf]
        %v568 = vld [vmem:[%s341 + $0x4] sm:$0xf]
        %v569 = vld [vmem:[%s341 + $0x8] sm:$0xf]
        %v570 = vld [vmem:[%s341 + $0xc] sm:$0xf]
        %v571 = vld [vmem:[%s341 + $0x10] sm:$0xf]
        %v572 = vld [vmem:[%s341 + $0x14] sm:$0xf]
        %v573 = vld [vmem:[%s341 + $0x18] sm:$0xf]
        %v574 = vld [vmem:[%s341 + $0x1c] sm:$0xf]
        %v575 = vld [vmem:[%s341 + $0x20] sm:$0xf]
        %v576 = vld [vmem:[%s341 + $0x24] sm:$0xf]
        %v577 = vld [vmem:[%s341 + $0x28] sm:$0xf]
        %v578 = vld [vmem:[%s341 + $0x2c] sm:$0xf]
        %v579 = vld [vmem:[%s341 + $0x30] sm:$0xf]
        %v580 = vld [vmem:[%s341 + $0x34] sm:$0xf]
        %v581 = vld [vmem:[%s341 + $0x38] sm:$0xf]
        %v582 = vld [vmem:[%s341 + $0x3c] sm:$0xf]
        %v599 = vunpack.c.l.b16 %v567
        %v600 = vunpack.c.l.b16 %v568
        %v601 = vunpack.c.l.b16 %v569
        %v602 = vunpack.c.l.b16 %v570
        %v603 = vunpack.c.l.b16 %v571
        %v604 = vunpack.c.l.b16 %v572
        %v605 = vunpack.c.l.b16 %v573
        %v606 = vunpack.c.l.b16 %v574
        %v607 = vunpack.c.l.b16 %v575
        %v608 = vunpack.c.l.b16 %v576
        %v609 = vunpack.c.l.b16 %v577
        %v610 = vunpack.c.l.b16 %v578
        %v611 = vunpack.c.l.b16 %v579
        %v612 = vunpack.c.l.b16 %v580
        %v613 = vunpack.c.l.b16 %v581
        %v614 = vunpack.c.l.b16 %v582
        %v615 = vpack.c.b16 %v600, %v599
        %v616 = vpack.c.b16 %v602, %v601
        %v617 = vpack.c.b16 %v604, %v603
        %v618 = vpack.c.b16 %v606, %v605
        %v619 = vpack.c.b16 %v608, %v607
        %v620 = vpack.c.b16 %v610, %v609
        %v621 = vpack.c.b16 %v612, %v611
        %v622 = vpack.c.b16 %v614, %v613
        %631 = vmatprep.subr.bf16.mxu0 0
        %632 = vmatpush1.bf16.msra.mxu0 %v615
        %633 = vmatprep.subr.bf16.mxu0 0
        %634 = vmatpush1.bf16.msra.mxu0 %v616
        %635 = vmatprep.subr.bf16.mxu0 0
        %636 = vmatpush1.bf16.msra.mxu0 %v617
        %637 = vmatprep.subr.bf16.mxu0 0
        %638 = vmatpush1.bf16.msra.mxu0 %v618
        %639 = vmatprep.subr.bf16.mxu0 0
        %640 = vmatpush1.bf16.msra.mxu0 %v619
        %641 = vmatprep.subr.bf16.mxu0 0
        %642 = vmatpush1.bf16.msra.mxu0 %v620
        %643 = vmatprep.subr.bf16.mxu0 0
        %644 = vmatpush1.bf16.msra.mxu0 %v621
        %645 = vmatprep.subr.bf16.mxu0 0
        %646 = vmatpush1.bf16.msra.mxu0 %v622
        %647 = vmatprep.subr.bf16.mxu0 0
        %648 = vmatpush1.bf16.msra.mxu0 0
        %649 = vmatprep.subr.bf16.mxu0 0
        %650 = vmatpush1.bf16.msra.mxu0 0
        %651 = vmatprep.subr.bf16.mxu0 0
        %652 = vmatpush1.bf16.msra.mxu0 0
        %653 = vmatprep.subr.bf16.mxu0 0
        %654 = vmatpush1.bf16.msra.mxu0 0
        %655 = vmatprep.subr.bf16.mxu0 0
        %656 = vmatpush1.bf16.msra.mxu0 0
        %657 = vmatprep.subr.bf16.mxu0 0
        %658 = vmatpush1.bf16.msra.mxu0 0
        %659 = vmatprep.subr.bf16.mxu0 0
        %660 = vmatpush1.bf16.msra.mxu0 0
        %661 = vmatprep.subr.bf16.mxu0 0
        %662 = vmatpush1.bf16.msra.mxu0 0
        %663 = vmatprep.mubr.bf16.mxu0 0
        %664 = vmatmul.mubr.bf16.gmra.mrb[0].mxu0 %v566
        %v665 = vpop.f32.mrb[0].mxu0
        %v666 = vadd.f32 0.0, %v665
        %v667 = vpop.f32.mrb[0].mxu0
        %v668 = vpop.f32.mrb[0].mxu0
        %v669 = vadd.f32 0.0, %v668
        %v670 = vpop.f32.mrb[0].mxu0
        %671 = vdwg.mxu0
        %v672 = vtanh.pop %v666
        %v673 = vtanh.pop %v669
        %v674 = vpack.c.bf16 %v673, %v672
        %675 = vmatprep.subr.bf16.mxu0 0
        %676 = vmatpush1.bf16.msra.mxu0 %v674
        %677 = vmatprep.subr.bf16.mxu0 0
        %678 = vmatpush1.bf16.msra.mxu0 0
        %679 = vmatprep.subr.bf16.mxu0 0
        %680 = vmatpush1.bf16.msra.mxu0 0
        %681 = vmatprep.subr.bf16.mxu0 0
        %682 = vmatpush1.bf16.msra.mxu0 0
        %683 = vmatprep.subr.bf16.mxu0 0
        %684 = vmatpush1.bf16.msra.mxu0 0
        %685 = vmatprep.subr.bf16.mxu0 0
        %686 = vmatpush1.bf16.msra.mxu0 0
        %687 = vmatprep.subr.bf16.mxu0 0
        %688 = vmatpush1.bf16.msra.mxu0 0
        %689 = vmatprep.subr.bf16.mxu0 0
        %690 = vmatpush1.bf16.msra.mxu0 0
        %691 = vmatprep.subr.bf16.mxu0 0
        %692 = vmatpush1.bf16.msra.mxu0 0
        %693 = vmatprep.subr.bf16.mxu0 0
        %694 = vmatpush1.bf16.msra.mxu0 0
        %695 = vmatprep.subr.bf16.mxu0 0
        %696 = vmatpush1.bf16.msra.mxu0 0
        %697 = vmatprep.subr.bf16.mxu0 0
        %698 = vmatpush1.bf16.msra.mxu0 0
        %699 = vmatprep.subr.bf16.mxu0 0
        %700 = vmatpush1.bf16.msra.mxu0 0
        %701 = vmatprep.subr.bf16.mxu0 0
        %702 = vmatpush1.bf16.msra.mxu0 0
        %703 = vmatprep.subr.bf16.mxu0 0
        %704 = vmatpush1.bf16.msra.mxu0 0
        %705 = vmatprep.subr.bf16.mxu0 0
        %706 = vmatpush1.bf16.msra.mxu0 0
        %707 = vmatprep.mubr.bf16.mxu0 0
        %708 = vmatmul.mubr.bf16.gmra.mrb[0].mxu0 %v523
        %v709 = vpop.f32.mrb[0].mxu0
        %v710 = vadd.f32 0.0, %v709
        %v711 = vpop.f32.mrb[0].mxu0
        %v712 = vpop.f32.mrb[0].mxu0
        %v713 = vadd.f32 0.0, %v712
        %v714 = vpop.f32.mrb[0].mxu0
        %715 = vdwg.mxu0
        %v716 = vpack.c.bf16 %v713, %v710
        %v717 = vld [vmem:[%s350] sm:$0xf]
        %v718 = vld [vmem:[%s350 + $0x4] sm:$0xf]
        %v719 = vld [vmem:[%s350 + $0x8] sm:$0xf]
        %v720 = vld [vmem:[%s350 + $0xc] sm:$0xf]
        %v721 = vld [vmem:[%s350 + $0x10] sm:$0xf]
        %v722 = vld [vmem:[%s350 + $0x14] sm:$0xf]
        %v723 = vld [vmem:[%s350 + $0x18] sm:$0xf]
        %v724 = vld [vmem:[%s350 + $0x1c] sm:$0xf]
        %v725 = vld [vmem:[%s350 + $0x20] sm:$0xf]
        %v726 = vld [vmem:[%s350 + $0x24] sm:$0xf]
        %v727 = vld [vmem:[%s350 + $0x28] sm:$0xf]
        %v728 = vld [vmem:[%s350 + $0x2c] sm:$0xf]
        %v729 = vld [vmem:[%s350 + $0x30] sm:$0xf]
        %v730 = vld [vmem:[%s350 + $0x34] sm:$0xf]
        %v731 = vld [vmem:[%s350 + $0x38] sm:$0xf]
        %v732 = vld [vmem:[%s350 + $0x3c] sm:$0xf]
        %v749 = vunpack.c.l.b16 %v717
        %v750 = vunpack.c.l.b16 %v718
        %v751 = vunpack.c.l.b16 %v719
        %v752 = vunpack.c.l.b16 %v720
        %v753 = vunpack.c.l.b16 %v721
        %v754 = vunpack.c.l.b16 %v722
        %v755 = vunpack.c.l.b16 %v723
        %v756 = vunpack.c.l.b16 %v724
        %v757 = vunpack.c.l.b16 %v725
        %v758 = vunpack.c.l.b16 %v726
        %v759 = vunpack.c.l.b16 %v727
        %v760 = vunpack.c.l.b16 %v728
        %v761 = vunpack.c.l.b16 %v729
        %v762 = vunpack.c.l.b16 %v730
        %v763 = vunpack.c.l.b16 %v731
        %v764 = vunpack.c.l.b16 %v732
        %v765 = vpack.c.b16 %v750, %v749
        %v766 = vpack.c.b16 %v752, %v751
        %v767 = vpack.c.b16 %v754, %v753
        %v768 = vpack.c.b16 %v756, %v755
        %v769 = vpack.c.b16 %v758, %v757
        %v770 = vpack.c.b16 %v760, %v759
        %v771 = vpack.c.b16 %v762, %v761
        %v772 = vpack.c.b16 %v764, %v763
        %781 = vmatprep.subr.bf16.mxu0 0
        %782 = vmatpush1.bf16.msra.mxu0 %v765
        %783 = vmatprep.subr.bf16.mxu0 0
        %784 = vmatpush1.bf16.msra.mxu0 %v766
        %785 = vmatprep.subr.bf16.mxu0 0
        %786 = vmatpush1.bf16.msra.mxu0 %v767
        %787 = vmatprep.subr.bf16.mxu0 0
        %788 = vmatpush1.bf16.msra.mxu0 %v768
        %789 = vmatprep.subr.bf16.mxu0 0
        %790 = vmatpush1.bf16.msra.mxu0 %v769
        %791 = vmatprep.subr.bf16.mxu0 0
        %792 = vmatpush1.bf16.msra.mxu0 %v770
        %793 = vmatprep.subr.bf16.mxu0 0
        %794 = vmatpush1.bf16.msra.mxu0 %v771
        %795 = vmatprep.subr.bf16.mxu0 0
        %796 = vmatpush1.bf16.msra.mxu0 %v772
        %797 = vmatprep.subr.bf16.mxu0 0
        %798 = vmatpush1.bf16.msra.mxu0 0
        %799 = vmatprep.subr.bf16.mxu0 0
        %800 = vmatpush1.bf16.msra.mxu0 0
        %801 = vmatprep.subr.bf16.mxu0 0
        %802 = vmatpush1.bf16.msra.mxu0 0
        %803 = vmatprep.subr.bf16.mxu0 0
        %804 = vmatpush1.bf16.msra.mxu0 0
        %805 = vmatprep.subr.bf16.mxu0 0
        %806 = vmatpush1.bf16.msra.mxu0 0
        %807 = vmatprep.subr.bf16.mxu0 0
        %808 = vmatpush1.bf16.msra.mxu0 0
        %809 = vmatprep.subr.bf16.mxu0 0
        %810 = vmatpush1.bf16.msra.mxu0 0
        %811 = vmatprep.subr.bf16.mxu0 0
        %812 = vmatpush1.bf16.msra.mxu0 0
        %813 = vmatprep.mubr.bf16.mxu0 0
        %814 = vmatmul.mubr.bf16.gmra.mrb[0].mxu0 %v716
        %v815 = vpop.f32.mrb[0].mxu0
        %v816 = vadd.f32 0.0, %v815
        %v817 = vpop.f32.mrb[0].mxu0
        %v818 = vpop.f32.mrb[0].mxu0
        %v819 = vadd.f32 0.0, %v818
        %v820 = vpop.f32.mrb[0].mxu0
        %821 = vdwg.mxu0
        %v822 = vpack.c.bf16 %v819, %v816
        %823 = vmatprep.subr.bf16.mxu0 0
        %824 = vmatpush1.bf16.msra.mxu0 %v822
        %825 = vmatprep.subr.bf16.mxu0 0
        %826 = vmatpush1.bf16.msra.mxu0 0
        %827 = vmatprep.subr.bf16.mxu0 0
        %828 = vmatpush1.bf16.msra.mxu0 0
        %829 = vmatprep.subr.bf16.mxu0 0
        %830 = vmatpush1.bf16.msra.mxu0 0
        %831 = vmatprep.subr.bf16.mxu0 0
        %832 = vmatpush1.bf16.msra.mxu0 0
        %833 = vmatprep.subr.bf16.mxu0 0
        %834 = vmatpush1.bf16.msra.mxu0 0
        %835 = vmatprep.subr.bf16.mxu0 0
        %836 = vmatpush1.bf16.msra.mxu0 0
        %837 = vmatprep.subr.bf16.mxu0 0
        %838 = vmatpush1.bf16.msra.mxu0 0
        %839 = vmatprep.subr.bf16.mxu0 0
        %840 = vmatpush1.bf16.msra.mxu0 0
        %841 = vmatprep.subr.bf16.mxu0 0
        %842 = vmatpush1.bf16.msra.mxu0 0
        %843 = vmatprep.subr.bf16.mxu0 0
        %844 = vmatpush1.bf16.msra.mxu0 0
        %845 = vmatprep.subr.bf16.mxu0 0
        %846 = vmatpush1.bf16.msra.mxu0 0
        %847 = vmatprep.subr.bf16.mxu0 0
        %848 = vmatpush1.bf16.msra.mxu0 0
        %849 = vmatprep.subr.bf16.mxu0 0
        %850 = vmatpush1.bf16.msra.mxu0 0
        %851 = vmatprep.subr.bf16.mxu0 0
        %852 = vmatpush1.bf16.msra.mxu0 0
        %853 = vmatprep.subr.bf16.mxu0 0
        %854 = vmatpush1.bf16.msra.mxu0 0
        %855 = vmatprep.mubr.bf16.mxu0 0
        %856 = vmatmul.mubr.bf16.gmra.mrb[0].mxu0 %v523
        %v857 = vpop.f32.mrb[0].mxu0
        %v858 = vadd.f32 0.0, %v857
        %v859 = vpop.f32.mrb[0].mxu0
        %v860 = vpop.f32.mrb[0].mxu0
        %v861 = vadd.f32 0.0, %v860
        %v862 = vpop.f32.mrb[0].mxu0
        %863 = vdwg.mxu0
        %v864 = vpack.c.bf16 %v861, %v858
        %v866 = vunpack.c.l.b16 %v864
        %v867 = vunpack.c.h.b16 %v864
        %v868 = vpack.c.b16 %v866, %v866
        %v869 = vpack.c.b16 %v867, %v867
        %872 = vst [vmem:[%s396] sm:$0xf] %v868
        %873 = vst [vmem:[%s396 + $0x4] sm:$0xf] %v869
        %s874 = sand.u32 %s166, 1
        %s875 = scalar_lea.sflag [#allocation4], %s874
        %s876 = sand.u32 %s166, 1
        %s877 = smul.addr %s876, 8
        %s878 = scalar_lea.vmem [#allocation11], %s877
        // Predicated region
        $region61: #{tpu_custom_call.1} parent=39 // pred_check
          %p879 = pneg %p176
        $region62: #{tpu_custom_call.1} parent=39 // pred_check_branch
          %881 = sbr.rel (%p879) target = $region64
        $region63: #{tpu_custom_call.1} parent=39 // pred_region
          %s883 = ssub.s32 128, 128
          %884 = vsyncadd %s875, %s883
          %s885 = smul.addr %s28, 2
          %s886 = smul.addr %s885, 64
          %s887 = scalar_lea.hbm %s5, %s886
          %s888 = sshll.u32 %s878, 4
          %s889 = int_to_ptr.vmem [resolvable:$true] %s888
          %894 = dma.vmem_to_hbm [thread:$0]  %s889, 128, %s887, %s875, 64, 64, 4
        $region64: #{tpu_custom_call.1} parent=39 // pred_fallthru
          _
      $region40: #{tpu_custom_call.1} parent=5 // pred_fallthru
        _
      %p895 = scmp.le.s32.totalorder 2, %s23
      // Predicated region
      $region65: #{tpu_custom_call.1} parent=5 // pred_check
        %p896 = pneg %p895
      $region66: #{tpu_custom_call.1} parent=5 // pred_check_branch
        %898 = sbr.rel (%p896) target = $region68
      $region67: #{tpu_custom_call.1} parent=5 // pred_region
        %s899 = ssub.s32 %s23, 2
        // Predicated region
        $region69: #{tpu_custom_call.1} parent=67 // pred_check
          %p900 = pneg %p182
        $region70: #{tpu_custom_call.1} parent=67 // pred_check_branch
          %902 = sbr.rel (%p900) target = $region72
        $region71: #{tpu_custom_call.1} parent=67 // pred_region
          %s903 = sand.u32 %s167, 1
          %s904 = scalar_lea.sflag [#allocation4], %s903
          %s905 = sand.u32 %s167, 1
          %s906 = smul.addr %s905, 8
          %s907 = scalar_lea.vmem [#allocation11], %s906
          %908 = dma.done %s904, 128
        $region72: #{tpu_custom_call.1} parent=67 // pred_fallthru
          _
      $region68: #{tpu_custom_call.1} parent=5 // pred_fallthru
        _
    $region6: #{tpu_custom_call.1} parent=1 // loop_footer
      %s27 = sadd.s32 1, %s23
    $region7: #{tpu_custom_call.1} parent=1 // loop_footer_branch
      %22 = sbr.rel target = $region3
    $region8: #{tpu_custom_call.1} parent=1 // loop_exit
      _
    %909 = vsyncpa [#allocation3], 1
    %s910 = scalar_lea.sflag [#allocation3], 1
    %911 = vsyncpa %s910, 1
    %912 = vsyncpa [#allocation6], 1
    %s913 = scalar_lea.sflag [#allocation6], 1
    %914 = vsyncpa %s913, 1
    %915 = vsyncpa [#allocation9], 1
    %s916 = scalar_lea.sflag [#allocation9], 1
    %917 = vsyncpa %s916, 1
    %918 = vsyncpa [#allocation4], 1
    %s919 = scalar_lea.sflag [#allocation4], 1
    %920 = vsyncpa %s919, 1

</llo_original>
